<compile_context>
chip_gen: v7x
topology: tpu7x:2x2x1
jax: 0.10.0
libtpu: 0.0.40
codegen_flags: <defaults>
</compile_context>

<pallas_src>
import functools
import math

import jax
import jax.numpy as jnp
from jax import lax
from jax.experimental import pallas as pl
from jax.experimental.pallas import tpu as pltpu

_EPS = 1e-12  # torch.nn.functional.normalize default


# --------------------------------------------------------------------------
# Kernel
# --------------------------------------------------------------------------
def _pool_norm_kernel(*refs, seq_len, l_tile, scale, has_mask):
    """Fused (masked) mean-pool over axis 1 + L2-normalize over axis -1.

    Block shapes:
      x_ref : (bt, lt, D)        m_ref : (bt, 1, lt)   (lane-dense mask)
      o_ref : (bt, 1, D)         acc   : (bt, 1, D) f32   cnt : (bt, 1, 1) f32
    Grid: (batch tiles [parallel], seq tiles [arbitrary / reduction]).
    """
    if has_mask:
        x_ref, m_ref, o_ref, acc_ref, cnt_ref = refs
    else:
        x_ref, o_ref, acc_ref = refs
        m_ref = cnt_ref = None

    bt, lt, d = x_ref.shape
    li = pl.program_id(1)
    nl = pl.num_programs(1)

    @pl.when(li == 0)
    def _init():
        acc_ref[...] = jnp.zeros_like(acc_ref)
        if has_mask:
            cnt_ref[...] = jnp.zeros_like(cnt_ref)

    def accumulate(tail):
        # Weighted sequence reduction for this block, offloaded to the MXU:
        # per batch row acc[b] += w[b] @ x[b], w a (1, lt) mask/ones row.
        if tail:
            # Gated to the ragged last tile only.  Zero BOTH x and w in the
            # out-of-range rows with where (0 * stale NaN would still be NaN).
            pos_x = li * l_tile + lax.broadcasted_iota(jnp.int32, (lt, d), 0)
            valid_x = pos_x < seq_len                         # (lt, d)
            pos_w = li * l_tile + lax.broadcasted_iota(jnp.int32, (1, lt), 1)
            valid_w = pos_w < seq_len                         # (1, lt)

        if not has_mask:
            # hoisted constant row (not rebuilt per batch row)
            const_w = (valid_w.astype(x_ref.dtype) if tail
                       else jnp.ones((1, lt), x_ref.dtype))

        for b in range(bt):                                   # static, bt <= 8
            xb = x_ref[b]                                     # (lt, d)
            if tail:
                xb = jnp.where(valid_x, xb, jnp.zeros_like(xb))
            if has_mask:
                wb32 = m_ref[b].astype(jnp.float32)           # (1, lt)
                if tail:
                    wb32 = jnp.where(valid_w, wb32, 0.0)
                cnt_ref[b] += jnp.sum(wb32, axis=-1, keepdims=True)
                # binary (0/1) masks stay exact after the cast to x's dtype
                wb = wb32.astype(x_ref.dtype)
            else:
                wb = const_w
            acc_ref[b] += jnp.dot(wb, xb, preferred_element_type=jnp.float32)

    if seq_len == 1:
        # Already-pooled 2-D inputs routed through with L == 1: skip the MXU.
        x1 = x_ref[...].astype(jnp.float32)
        if has_mask:
            w1 = m_ref[...].astype(jnp.float32)
            acc_ref[...] += x1 * w1
            cnt_ref[...] += w1
        else:
            acc_ref[...] += x1
    elif seq_len % l_tile == 0:
        accumulate(tail=False)
    else:
        @pl.when(li < nl - 1)
        def _body():
            accumulate(tail=False)

        @pl.when(li == nl - 1)
        def _ragged_tail():
            accumulate(tail=True)

    @pl.when(li == nl - 1)
    def _finalize():
        acc = acc_ref[...]                                    # (bt, 1, d) f32
        if has_mask:
            # torch MeanPooling: sum / mask.sum() (no clamp; a fully masked
            # row yields inf/nan exactly like the PyTorch module)
            mean = acc / cnt_ref[...]
        else:
            mean = acc * (1.0 / float(seq_len))
        sq = jnp.sum(mean * mean, axis=-1, keepdims=True)     # (bt, 1, 1)
        norm = jnp.sqrt(sq)
        out = mean / jnp.maximum(norm, _EPS)                  # F.normalize(p=2)
        if scale != 1.0:                                      # LearnableLogitScaling
            out = out * scale
        o_ref[...] = out.astype(o_ref.dtype)


# --------------------------------------------------------------------------
# Tiling / VMEM budgeting
# --------------------------------------------------------------------------
def _tpu_generation():
    try:
        kind = jax.devices()[0].device_kind.lower()
    except Exception:
        return 0
    if "v7" in kind or "7x" in kind:
        return 7
    if "v6" in kind:
        return 6
    if "v5" in kind:
        return 5
    if "v4" in kind:
        return 4
    return 0


def _round_up(v, m):
    return -(-v // m) * m


def _choose_tiles(batch, seq_len, d, itemsize, target_bytes, has_mask,
                  batch_tile=None, seq_tile=None):
    # Sequence-tile granularity: with a mask the (bt, 1, lt) mask block puts lt
    # on lanes -> multiple of 128 (or full L); otherwise only the sublane rule
    # of the (bt, lt, D) x block applies -> multiple of 8 (or full L).
    g = 128 if has_mask else 8

    if batch_tile is not None:
        bt = max(1, min(batch, int(batch_tile)))
    else:
        bt = min(8, batch)
        if batch >= 2:
            # keep >= 2 batch tiles so the 'parallel' axis shards across v7x's
            # two TensorCores (harmless on single-TC v5e/v6e).
            bt = min(bt, pl.cdiv(batch, 2))
    row_bytes = d * itemsize

    if seq_tile is not None:
        lt = int(seq_tile)
        lt = seq_len if lt >= seq_len else max(g, (lt // g) * g)
    elif bt * seq_len * row_bytes <= target_bytes or seq_len <= g:
        lt = seq_len
        while bt > 1 and bt * lt * row_bytes > target_bytes:
            bt = max(1, bt // 2)
        # TODO(synk): tile the feature axis too when even a (1, L, D) block
        # exceeds the VMEM budget (extremely wide d_model).
    else:
        lt = max(g, (target_bytes // (bt * row_bytes)) // g * g)
        lt = min(lt, (seq_len // g) * g) if seq_len >= g else seq_len
        # prefer an lt that divides seq_len so the ragged-tail branch vanishes
        cand = lt
        while cand >= max(g, lt // 2):
            if seq_len % cand == 0:
                lt = cand
                break
            cand -= g
    return bt, lt


def _vmem_limit_bytes(bt, lt, d, x_isz, m_isz, o_isz, has_mask, gen):
    # True padded footprint: x + mask double-buffered, output double-buffered,
    # accumulators; plus headroom for Mosaic internal scratch.
    x_blk = bt * _round_up(max(lt, 1), 8) * _round_up(d, 128) * x_isz
    out_blk = bt * 8 * _round_up(d, 128) * o_isz
    acc = bt * 8 * _round_up(d, 128) * 4
    need = 2 * x_blk + 2 * out_blk + acc
    if has_mask:
        m_blk = bt * 8 * _round_up(max(lt, 1), 128) * m_isz
        need += 2 * m_blk + bt * 8 * 128 * 4
    cap = (100 << 20) if gen in (5, 6) else (56 << 20)   # v7x VMEM is 64 MiB
    return int(min(cap, max(32 << 20, need + (4 << 20))))


# --------------------------------------------------------------------------
# Wrapper
# --------------------------------------------------------------------------
def _fused_mean_pool_l2norm(x, mask, scale, batch_tile=None, seq_tile=None,
                            target_block_bytes=None):
    """x: (B, L, D) -> (B, D); (masked) mean over L then L2-normalize over D."""
    batch, seq_len, d = x.shape
    has_mask = mask is not None
    if has_mask:
        if not jnp.issubdtype(mask.dtype, jnp.floating):
            mask = mask.astype(x.dtype)          # bool/int masks -> weights
        mask = mask.reshape(batch, 1, seq_len)   # free unit-dim insert, L stays on lanes

    gen = _tpu_generation()
    if target_block_bytes is None:
        target_block_bytes = (8 << 20) if gen >= 6 else (4 << 20)
    bt, lt = _choose_tiles(batch, seq_len, d, x.dtype.itemsize,
                           target_block_bytes, has_mask, batch_tile, seq_tile)
    grid = (pl.cdiv(batch, bt), pl.cdiv(seq_len, lt))

    kernel = functools.partial(_pool_norm_kernel, seq_len=seq_len, l_tile=lt,
                               scale=float(scale), has_mask=has_mask)

    in_specs = [pl.BlockSpec((bt, lt, d), lambda b, l: (b, l, 0))]
    inputs = [x]
    scratch = [pltpu.VMEM((bt, 1, d), jnp.float32)]
    if has_mask:
        in_specs.append(pl.BlockSpec((bt, 1, lt), lambda b, l: (b, 0, l)))
        inputs.append(mask)
        scratch.append(pltpu.VMEM((bt, 1, 1), jnp.float32))

    vmem_limit = _vmem_limit_bytes(
        bt, lt, d, x.dtype.itemsize,
        mask.dtype.itemsize if has_mask else 0, x.dtype.itemsize,
        has_mask, gen)

    out = pl.pallas_call(
        kernel,
        out_shape=jax.ShapeDtypeStruct((batch, 1, d), x.dtype),
        grid_spec=pltpu.PrefetchScalarGridSpec(
            num_scalar_prefetch=0,
            grid=grid,
            in_specs=in_specs,
            out_specs=pl.BlockSpec((bt, 1, d), lambda b, l: (b, 0, 0)),
            scratch_shapes=scratch,
        ),
        compiler_params=pltpu.CompilerParams(
            dimension_semantics=("parallel", "arbitrary"),
            vmem_limit_bytes=vmem_limit),
    )(*inputs)
    return out.reshape(batch, d)   # drop the unit dim (free metadata reshape)


def base_encoder_forward(x, input_mask=None, *, use_logit_scale=False,
                         log_logit_scale=None, max_logit_scale=100.0,
                         batch_tile=None, seq_tile=None,
                         target_block_bytes=None):
    """BaseEncoder.forward, default config:
       MeanPooling -> Identity projection -> Normalize(dim=-1)
       [+ optional LearnableLogitScaling, folded in as a scalar].
    """
    # TODO(synk): proj_type='linear'/'mlp' (LayerNorm + Linear [+ GELU]) and
    # pooling_type='attention1d'/'cls' are not implemented; only the default
    # BaseEncoder configuration is covered.
    scale = 1.0
    if use_logit_scale:
        lls = math.log(1.0 / 0.07) if log_logit_scale is None else float(log_logit_scale)
        scale = min(math.exp(lls), float(max_logit_scale))

    if x.ndim == 2:
        # MeanPooling returns 2-D features unchanged; only the norm applies.
        return _fused_mean_pool_l2norm(x[:, None, :], None, scale,
                                       batch_tile, seq_tile, target_block_bytes)
    return _fused_mean_pool_l2norm(x, input_mask, scale,
                                   batch_tile, seq_tile, target_block_bytes)


# --------------------------------------------------------------------------
# Pure-JAX reference + self-test
# --------------------------------------------------------------------------
def _reference(x, input_mask=None):
    if x.ndim == 2:
        pooled = x.astype(jnp.float32)
    elif input_mask is not None:
        m = input_mask.astype(jnp.float32)
        pooled = (jnp.sum(x.astype(jnp.float32) * m[:, :, None], axis=1)
                  / jnp.sum(m, axis=1, keepdims=True))
    else:
        pooled = jnp.mean(x.astype(jnp.float32), axis=1)
    norm = jnp.sqrt(jnp.sum(pooled * pooled, axis=-1, keepdims=True))
    return (pooled / jnp.maximum(norm, _EPS)).astype(x.dtype)


if __name__ == "__main__":
    key = jax.random.PRNGKey(0)
    k1, k2, k3, k4, k5 = jax.random.split(key, 5)

    # Tolerances are relaxed enough to cover MXU f32-via-bf16-pass accumulation
    # (worst case ~0.4% relative) while still catching genuine bugs (O(1)).
    def check(actual, expected, name, atol=1e-2, rtol=1e-2):
        assert actual.shape == expected.shape, (
            f"{name}: shape {actual.shape} vs {expected.shape}")
        if not jnp.allclose(actual, expected, atol=atol, rtol=rtol):
            err = float(jnp.max(jnp.abs(actual - expected)))
            raise AssertionError(f"{name}: max abs err {err}")

    B, L, D = 2, 8, 128                      # BaseEncoder(d_model=128, output_dim=128)
    x = jax.random.normal(k1, (B, L, D), dtype=jnp.float32)

    # 1) default path: mean pooling (no mask) -> identity proj -> L2 normalize
    y = jax.block_until_ready(base_encoder_forward(x))
    check(y, _reference(x), "no-mask")

    # 2) masked mean pooling
    mask = (jax.random.uniform(k2, (B, L)) > 0.3).astype(jnp.float32)
    mask = mask.at[:, 0].set(1.0)            # guarantee >=1 valid per row
    ym = jax.block_until_ready(base_encoder_forward(x, input_mask=mask))
    check(ym, _reference(x, mask), "masked")

    # 3) already-pooled 2-D features: only the L2 normalization applies
    x2 = jax.random.normal(k3, (B, D), dtype=jnp.float32)
    y2 = jax.block_until_ready(base_encoder_forward(x2))
    check(y2, _reference(x2), "2-D")

    # 4) multi-tile accumulation, masked, ragged seq tail + ragged batch tail
    B4, L4 = 3, 320
    x4 = jax.random.normal(k4, (B4, L4, D), dtype=jnp.float32)
    m4 = (jax.random.uniform(k5, (B4, L4)) > 0.5).astype(jnp.float32)
    m4 = m4.at[:, 0].set(1.0)
    y4 = jax.block_until_ready(
        base_encoder_forward(x4, input_mask=m4, seq_tile=128))
    check(y4, _reference(x4, m4), "masked multi-tile")

    # 5) multi-tile accumulation, no mask, ragged seq tail (320 % 48 != 0)
    y5 = jax.block_until_ready(base_encoder_forward(x4, seq_tile=48))
    check(y5, _reference(x4), "no-mask multi-tile")

    # 6) use_logit_scale=True (non-learnable): scale folded into the kernel
    ys = jax.block_until_ready(base_encoder_forward(x, use_logit_scale=True))
    check(ys, _reference(x) * min(1.0 / 0.07, 100.0), "logit-scale")

    print("KERNEL_OK")
</pallas_src>

<mosaic_0001>
module attributes {stable_mosaic.version = 11 : i64} {
  func.func @_pool_norm_kernel(%arg0: i32, %arg1: i32, %arg2: memref<1x8x128xf32, #tpu.memory_space<vmem>>, %arg3: memref<1x1x128xf32, #tpu.memory_space<vmem>>, %arg4: memref<1x1x128xf32, #tpu.memory_space<vmem>>) attributes {dimension_semantics = [#tpu.dimension_semantics<parallel>, #tpu.dimension_semantics<arbitrary>], iteration_bounds = array<i64: 2, 1>, scalar_prefetch = 0 : i64, scratch_operands = 1 : i64, tpu.core_type = #tpu.core_type<tc>, window_params = [{transform_indices = @transform_0, window_bounds = array<i64: 1, 8, 128>}, {transform_indices = @transform_1, window_bounds = array<i64: 1, 1, 128>}]} {
    %c0_i32 = arith.constant 0 : i32
    %0 = arith.cmpi eq, %arg1, %c0_i32 : i32
    %1 = arith.extui %0 : i1 to i32
    %c0_i32_0 = arith.constant 0 : i32
    %2 = arith.cmpi ne, %1, %c0_i32_0 : i32
    scf.if %2 {
      %cst_12 = arith.constant 0.000000e+00 : f32
      %16 = vector.broadcast %cst_12 : f32 to vector<1x1x128xf32>
      %c0_13 = arith.constant 0 : index
      %c0_14 = arith.constant 0 : index
      %c0_15 = arith.constant 0 : index
      %17 = vector.load %arg4[%c0_13, %c0_14, %c0_15] : memref<1x1x128xf32, #tpu.memory_space<vmem>>, vector<1x1x128xf32>
      tpu.vector_store %arg4[%c0_13, %c0_14, %c0_15], %16 {strides = array<i32>} : memref<1x1x128xf32, #tpu.memory_space<vmem>>, vector<1x1x128xf32>,
    } else {
    }
    %cst = arith.constant 1.000000e+00 : f32
    %3 = vector.broadcast %cst : f32 to vector<1x8xf32>
    %c0 = arith.constant 0 : index
    %c0_1 = arith.constant 0 : index
    %c0_2 = arith.constant 0 : index
    %4 = vector.load %arg2[%c0, %c0_1, %c0_2] : memref<1x8x128xf32, #tpu.memory_space<vmem>>, vector<1x8x128xf32>
    %5 = vector.shape_cast %4 : vector<1x8x128xf32> to vector<8x128xf32>
    %c0_3 = arith.constant 0 : index
    %c0_4 = arith.constant 0 : index
    %c0_5 = arith.constant 0 : index
    %6 = vector.load %arg4[%c0_3, %c0_4, %c0_5] : memref<1x1x128xf32, #tpu.memory_space<vmem>>, vector<1x1x128xf32>
    %7 = vector.shape_cast %6 : vector<1x1x128xf32> to vector<1x128xf32>
    %cst_6 = arith.constant dense<0.000000e+00> : vector<1x128xf32>
    %8 = tpu.matmul %3, %5, %cst_6 {dimension_numbers = #tpu.dot_dimension_numbers<[1], [0], [0], [1], [0, 0, 1, 1], [], []>} : vector<1x8xf32>, vector<8x128xf32>, vector<1x128xf32> -> vector<1x128xf32>
    %9 = arith.addf %7, %8 : vector<1x128xf32>
    %c0_7 = arith.constant 0 : index
    %c0_8 = arith.constant 0 : index
    %c0_9 = arith.constant 0 : index
    %10 = vector.load %arg4[%c0_7, %c0_8, %c0_9] : memref<1x1x128xf32, #tpu.memory_space<vmem>>, vector<1x1x128xf32>
    %11 = vector.shape_cast %10 : vector<1x1x128xf32> to vector<1x128xf32>
    %12 = vector.shape_cast %9 : vector<1x128xf32> to vector<1x1x128xf32>
    tpu.vector_store %arg4[%c0_7, %c0_8, %c0_9], %12 {strides = array<i32>} : memref<1x1x128xf32, #tpu.memory_space<vmem>>, vector<1x1x128xf32>,
    %c0_i32_10 = arith.constant 0 : i32
    %13 = arith.cmpi eq, %arg1, %c0_i32_10 : i32
    %14 = arith.extui %13 : i1 to i32
    %c0_i32_11 = arith.constant 0 : i32
    %15 = arith.cmpi ne, %14, %c0_i32_11 : i32
    scf.if %15 {
      %c0_12 = arith.constant 0 : index
      %c0_13 = arith.constant 0 : index
      %c0_14 = arith.constant 0 : index
      %16 = vector.load %arg4[%c0_12, %c0_13, %c0_14] : memref<1x1x128xf32, #tpu.memory_space<vmem>>, vector<1x1x128xf32>
      %cst_15 = arith.constant 1.250000e-01 : f32
      %17 = vector.broadcast %cst_15 : f32 to vector<1x1x128xf32>
      %18 = arith.mulf %16, %17 : vector<1x1x128xf32>
      %19 = arith.mulf %18, %18 : vector<1x1x128xf32>
      %cst_16 = arith.constant dense<0.000000e+00> : vector<1x1xf32>
      %20 = vector.multi_reduction <add>, %19, %cst_16 [2] : vector<1x1x128xf32> to vector<1x1xf32>
      %21 = vector.shape_cast %20 : vector<1x1xf32> to vector<1x1x1xf32>
      %22 = math.sqrt %21 : vector<1x1x1xf32>
      %cst_17 = arith.constant 9.99999996E-13 : f32
      %23 = vector.broadcast %cst_17 : f32 to vector<1x1x1xf32>
      %24 = arith.maximumf %22, %23 : vector<1x1x1xf32>
      %25 = vector.broadcast %24 : vector<1x1x1xf32> to vector<1x1x128xf32>
      %26 = arith.divf %18, %25 : vector<1x1x128xf32>
      %c0_18 = arith.constant 0 : index
      %c0_19 = arith.constant 0 : index
      %c0_20 = arith.constant 0 : index
      %27 = vector.load %arg3[%c0_18, %c0_19, %c0_20] : memref<1x1x128xf32, #tpu.memory_space<vmem>>, vector<1x1x128xf32>
      tpu.vector_store %arg3[%c0_18, %c0_19, %c0_20], %26 {strides = array<i32>} : memref<1x1x128xf32, #tpu.memory_space<vmem>>, vector<1x1x128xf32>,
    } else {
    }
    return
  }
  func.func @transform_0(%arg0: i32, %arg1: i32) -> (i32, i32, i32) {
    %c0_i32 = arith.constant 0 : i32
    %c0_i32_0 = arith.constant 0 : i32
    return %arg0, %arg1, %c0_i32 : i32, i32, i32
  }
  func.func @transform_1(%arg0: i32, %arg1: i32) -> (i32, i32, i32) {
    %c0_i32 = arith.constant 0 : i32
    %c0_i32_0 = arith.constant 0 : i32
    %c0_i32_1 = arith.constant 0 : i32
    return %arg0, %c0_i32, %c0_i32_0 : i32, i32, i32
  }
}

</mosaic_0001>

<llo_original>
// kernel: tpu_custom_call.1
$region0: #{tpu_custom_call.1}
  #allocation0 [shape = 'u32[]', space=smem, size = 0x4, offset = 0x4, fixed_abs, tag = 'smem constant byte address 0x4 - core index']
  #allocation1 [shape = 'u32[144,128]{1,0:T(1,128)}', space=vmem, size = 0x12000, scoped, tag = 'internal scratch']
  #allocation2 [shape = 'f32[1,1,128]{2,1,0:T(1,128)}', space=vmem, size = 0x200, scoped, tag = 'scratch operand']
  %s0 = inlined_call_operand.hbm [shape: f32[2,8,128], index: 0, kind: input, shape index: {}]
  %s1 = inlined_call_operand.hbm [shape: f32[2,1,128], index: 1, kind: output, shape index: {}]
  %s2 = sld [smem:[#allocation0]]
  $region49: #{tpu_custom_call.1} parent=0
    _
  %s4 = ssub.s32 1, %s2
  %s5 = scalar_select 0, %s4, %s2
  $region1: #{tpu_custom_call.1} parent=0
    #allocation3 [shape = 'u8[8192]{0}', space=vmem, size = 0x2000, scoped, tag = 'input window, operand 0']
    #allocation4 [shape = 's32[2]{0}', space=sflag, size = 0x8, scoped, tag = 'scoped memory for tpu_custom_call.1']
    #allocation5 [shape = 's32[2]{0}', space=sflag, size = 0x8, scoped, tag = 'scoped memory for tpu_custom_call.1']
    #allocation6 [shape = 'u8[1024]{0}', space=vmem, size = 0x400, scoped, tag = 'output window, operand 0']
    %6 = vsyncpa [#allocation4], 0
    %s7 = scalar_lea.sflag [#allocation4], 1
    %8 = vsyncpa %s7, 0
    %9 = vsyncpa [#allocation5], 0
    %s10 = scalar_lea.sflag [#allocation5], 1
    %11 = vsyncpa %s10, 0
    loop: start=0, step=1, limit=4
    $region2: #{tpu_custom_call.1} parent=1 // loop_pre_header
      _
    $region3: #{tpu_custom_call.1} parent=1 // loop_header
      %s13 = sphi 0, %s17
      %p14 = scmp.ge.s32.totalorder %s13, 4
      %s20 = sphi 0, %s32
      %s21 = sphi 0, %s28
      %s22 = sphi 0, %s20
      %s23 = sphi 0, %s21
      %s24 = sphi 0, %s22
      %s25 = sphi 0, %s23
      %s37 = sphi 0, %s39
      %s40 = sphi 0, %s37
      %s41 = sphi 0, %s40
      %s57 = sphi 0, %s41
      %s63 = sphi 0, %s65
      %s66 = sphi 0, %s63
      %s67 = sphi 0, %s66
      %s83 = sphi 0, %s67
    $region4: #{tpu_custom_call.1} parent=1 // loop_header_branch
      %16 = sbr.rel (%p14) target = $region8
    $region5: #{tpu_custom_call.1} parent=1 // loop_body
      %s18 = ssub.s32 %s13, 1
      %s19 = ssub.s32 %s13, 2
      %s26 = sadd.s32 1, %s21
      %p27 = scmp.ge.s32.totalorder %s26, 1
      %s28 = scalar_select %p27, 0, %s26
      %s29 = sadd.s32 1, %s20
      %s30 = scalar_select %p27, %s29, %s20
      %p31 = scmp.ge.s32.totalorder %s30, 2
      %s32 = scalar_select %p31, 0, %s30
      %s33 = ssub.s32 %s20, %s32
      %s34 = ssub.s32 %s21, %s28
      %s35 = sor.u32 %s33, %s34
      %p36 = scmp.eq.s32.totalorder %s35, 0
      %s38 = sadd.s32 %s37, 1
      %s39 = scalar_select %p36, %s37, %s38
      %p42 = pneg %p36
      %p43 = scmp.eq.s32.totalorder %s13, 1
      %p44 = por %p42, %p43
      %p45 = scmp.ne.s32.totalorder %s37, %s40
      %p46 = scmp.eq.s32.totalorder %s13, 0
      %p47 = por %p45, %p46
      %p48 = scmp.ne.s32.totalorder %s37, %s40
      %p49 = scmp.eq.s32.totalorder %s18, 1
      %p50 = por %p48, %p49
      %p51 = scmp.ne.s32.totalorder %s40, %s41
      %p52 = scmp.eq.s32.totalorder %s18, 0
      %p53 = por %p51, %p52
      %p54 = scmp.ne.s32.totalorder %s40, %s41
      %p55 = scmp.eq.s32.totalorder %s19, 1
      %p56 = por %p54, %p55
      %p58 = scmp.ne.s32.totalorder %s41, %s57
      %p59 = scmp.eq.s32.totalorder %s19, 0
      %p60 = por %p58, %p59
      %s61 = ssub.s32 %s20, %s32
      %p62 = scmp.eq.s32.totalorder %s61, 0
      %s64 = sadd.s32 %s63, 1
      %s65 = scalar_select %p62, %s63, %s64
      %p68 = pneg %p62
      %p69 = scmp.eq.s32.totalorder %s13, 1
      %p70 = por %p68, %p69
      %p71 = scmp.ne.s32.totalorder %s63, %s66
      %p72 = scmp.eq.s32.totalorder %s13, 0
      %p73 = por %p71, %p72
      %p74 = scmp.ne.s32.totalorder %s63, %s66
      %p75 = scmp.eq.s32.totalorder %s18, 1
      %p76 = por %p74, %p75
      %p77 = scmp.ne.s32.totalorder %s66, %s67
      %p78 = scmp.eq.s32.totalorder %s18, 0
      %p79 = por %p77, %p78
      %p80 = scmp.ne.s32.totalorder %s66, %s67
      %p81 = scmp.eq.s32.totalorder %s19, 1
      %p82 = por %p80, %p81
      %p84 = scmp.ne.s32.totalorder %s67, %s83
      %p85 = scmp.eq.s32.totalorder %s19, 0
      %p86 = por %p84, %p85
      %p87 = scmp.le.s32.totalorder 1, %s13
      %p88 = scmp.lt.s32.totalorder %s13, 3
      %p89 = pnand %p87, %p88
      %p90 = pneg %p89
      // Predicated region
      $region9: #{tpu_custom_call.1} parent=5 // pred_check
        _
      $region10: #{tpu_custom_call.1} parent=5 // pred_check_branch
        %92 = sbr.rel (%p89) target = $region12
      $region11: #{tpu_custom_call.1} parent=5 // pred_region
        %s93 = ssub.s32 %s13, 1
      $region12: #{tpu_custom_call.1} parent=5 // pred_fallthru
        _
      %p94 = scmp.lt.s32.totalorder %s13, 2
      // Predicated region
      $region13: #{tpu_custom_call.1} parent=5 // pred_check
        %p95 = pneg %p94
      $region14: #{tpu_custom_call.1} parent=5 // pred_check_branch
        %97 = sbr.rel (%p95) target = $region16
      $region15: #{tpu_custom_call.1} parent=5 // pred_region
        // Predicated region
        $region17: #{tpu_custom_call.1} parent=15 // pred_check
          %p98 = pneg %p47
        $region18: #{tpu_custom_call.1} parent=15 // pred_check_branch
          %100 = sbr.rel (%p98) target = $region20
        $region19: #{tpu_custom_call.1} parent=15 // pred_region
          %s101 = sand.u32 %s37, 1
          %s102 = scalar_lea.sflag [#allocation4], %s101
          %s103 = sand.u32 %s37, 1
          %s104 = smul.addr %s103, 8
          %s105 = scalar_lea.vmem [#allocation3], %s104
          %s107 = ssub.s32 128, 128
          %108 = vsyncadd %s102, %s107
          %s109 = sadd.s32 %s21, %s20
          %s110 = smul.addr %s109, 128
          %s111 = scalar_lea.hbm %s0, %s110
          %s113 = sshll.u32 %s105, 4
          %s114 = int_to_ptr.vmem [resolvable:$true] %s113
          %116 = dma.hbm_to_vmem [thread:$0]  %s111, 128, %s114, %s102
        $region20: #{tpu_custom_call.1} parent=15 // pred_fallthru
          _
      $region16: #{tpu_custom_call.1} parent=5 // pred_fallthru
        _
      %p117 = scmp.le.s32.totalorder 1, %s13
      %p118 = scmp.lt.s32.totalorder %s13, 3
      %p119 = pnand %p117, %p118
      %p120 = pneg %p119
      // Predicated region
      $region21: #{tpu_custom_call.1} parent=5 // pred_check
        _
      $region22: #{tpu_custom_call.1} parent=5 // pred_check_branch
        %122 = sbr.rel (%p119) target = $region24
      $region23: #{tpu_custom_call.1} parent=5 // pred_region
        %s123 = ssub.s32 %s13, 1
        %s124 = sand.u32 %s40, 1
        %s125 = scalar_lea.sflag [#allocation4], %s124
        %s126 = sand.u32 %s40, 1
        %s127 = smul.addr %s126, 8
        %s128 = scalar_lea.vmem [#allocation3], %s127
        // Predicated region
        $region25: #{tpu_custom_call.1} parent=23 // pred_check
          %p129 = pneg %p53
        $region26: #{tpu_custom_call.1} parent=23 // pred_check_branch
          %131 = sbr.rel (%p129) target = $region28
        $region27: #{tpu_custom_call.1} parent=23 // pred_region
          %132 = dma.done %s125, 128
        $region28: #{tpu_custom_call.1} parent=23 // pred_fallthru
          _
        %s133 = sand.u32 %s40, 1
        %s134 = scalar_lea.sflag [#allocation4], %s133
        %s135 = sand.u32 %s40, 1
        %s136 = smul.addr %s135, 8
        %s137 = scalar_lea.vmem [#allocation3], %s136
        %p138 = pneg %p53
        %p139 = pneg %p50
        %p140 = pneg %p79
        %p141 = pneg %p76
        %s142 = sand.u32 %s66, 1
        %s143 = scalar_lea.sflag [#allocation5], %s142
        %s144 = sand.u32 %s66, 1
        %s145 = scalar_lea.vmem [#allocation6], %s144
        %p146 = scmp.eq.s32.totalorder %s23, 0
        // Predicated region
        $region29: #{tpu_custom_call.1} parent=23 // pred_check
          %p147 = pneg %p146
        $region30: #{tpu_custom_call.1} parent=23 // pred_check_branch
          %149 = sbr.rel (%p147) target = $region32
        $region31: #{tpu_custom_call.1} parent=23 // pred_region
          %150 = vst [vmem:[#allocation2] sm:$0x1] 0.0
        $region32: #{tpu_custom_call.1} parent=23 // pred_fallthru
          _
        %v151 = vld [vmem:[%s128] sm:$0xff]
        %v152 = vld [vmem:[#allocation2] sm:$0x1]
        %vm153 = vcmask 64512
        %v155 = vsel %vm153, 1.0, 0
        %157 = vmatprep.subr.mxu0 0.0
        %158 = vmatpush1.msra.mxu0 %v151
        %159 = vmatprep.subr.mxu0 0.0
        %160 = vmatpush1.msra.mxu0 0.0
        %161 = vmatprep.subr.mxu0 0.0
        %162 = vmatpush1.msra.mxu0 0.0
        %163 = vmatprep.subr.mxu0 0.0
        %164 = vmatpush1.msra.mxu0 0.0
        %165 = vmatprep.subr.mxu0 0.0
        %166 = vmatpush1.msra.mxu0 0.0
        %167 = vmatprep.subr.mxu0 0.0
        %168 = vmatpush1.msra.mxu0 0.0
        %169 = vmatprep.subr.mxu0 0.0
        %170 = vmatpush1.msra.mxu0 0.0
        %171 = vmatprep.subr.mxu0 0.0
        %172 = vmatpush1.msra.mxu0 0.0
        %173 = vmatprep.subr.mxu0 0.0
        %174 = vmatpush1.msra.mxu0 0.0
        %175 = vmatprep.subr.mxu0 0.0
        %176 = vmatpush1.msra.mxu0 0.0
        %177 = vmatprep.subr.mxu0 0.0
        %178 = vmatpush1.msra.mxu0 0.0
        %179 = vmatprep.subr.mxu0 0.0
        %180 = vmatpush1.msra.mxu0 0.0
        %181 = vmatprep.subr.mxu0 0.0
        %182 = vmatpush1.msra.mxu0 0.0
        %183 = vmatprep.subr.mxu0 0.0
        %184 = vmatpush1.msra.mxu0 0.0
        %185 = vmatprep.subr.mxu0 0.0
        %186 = vmatpush1.msra.mxu0 0.0
        %187 = vmatprep.subr.mxu0 0.0
        %188 = vmatpush1.msra.mxu0 0.0
        %189 = vmatprep.subr.mxu0 0.0
        %190 = vmatpush1.msra.mxu0 0.0
        %191 = vmatprep.subr.mxu0 0.0
        %192 = vmatpush1.msra.mxu0 0.0
        %193 = vmatprep.subr.mxu0 0.0
        %194 = vmatpush1.msra.mxu0 0.0
        %195 = vmatprep.subr.mxu0 0.0
        %196 = vmatpush1.msra.mxu0 0.0
        %197 = vmatprep.subr.mxu0 0.0
        %198 = vmatpush1.msra.mxu0 0.0
        %199 = vmatprep.subr.mxu0 0.0
        %200 = vmatpush1.msra.mxu0 0.0
        %201 = vmatprep.subr.mxu0 0.0
        %202 = vmatpush1.msra.mxu0 0.0
        %203 = vmatprep.subr.mxu0 0.0
        %204 = vmatpush1.msra.mxu0 0.0
        %205 = vmatprep.subr.mxu0 0.0
        %206 = vmatpush1.msra.mxu0 0.0
        %207 = vmatprep.subr.mxu0 0.0
        %208 = vmatpush1.msra.mxu0 0.0
        %209 = vmatprep.subr.mxu0 0.0
        %210 = vmatpush1.msra.mxu0 0.0
        %211 = vmatprep.subr.mxu0 0.0
        %212 = vmatpush1.msra.mxu0 0.0
        %213 = vmatprep.subr.mxu0 0.0
        %214 = vmatpush1.msra.mxu0 0.0
        %215 = vmatprep.subr.mxu0 0.0
        %216 = vmatpush1.msra.mxu0 0.0
        %217 = vmatprep.subr.mxu0 0.0
        %218 = vmatpush1.msra.mxu0 0.0
        %219 = vmatprep.subr.mxu0 0.0
        %220 = vmatpush1.msra.mxu0 0.0
        %221 = vmatprep.mubr.f32.mxu0 0.0
        %222 = vmatmul.mubr.f32.gmra.mrb[0].mxu0 %v155
        %v223 = vpop.f32.mrb[0].mxu0
        %v224 = vadd.f32 0.0, %v223
        %v225 = vpop.f32.mrb[0].mxu0
        %226 = vdwg.mxu0
        %v227 = vadd.f32 %v152, %v224
        %228 = vst [vmem:[#allocation2] sm:$0x1] %v227
        // Predicated region
        $region33: #{tpu_custom_call.1} parent=23 // pred_check
          %p229 = pneg %p146
        $region34: #{tpu_custom_call.1} parent=23 // pred_check_branch
          %231 = sbr.rel (%p229) target = $region36
        $region35: #{tpu_custom_call.1} parent=23 // pred_region
          %v232 = vld [vmem:[#allocation2] sm:$0x1]
          %v233 = vmul.f32 %v232, 0.125
          %v234 = vmul.f32 %v233, %v233
          %vm235 = vcmask 1040384
          %v236 = vsel %vm235, %v234, 0.0
          %237 = vadd.xlane.f32.xlu0 %v236
          %v238 = vpop.xlane.xlu0 %237
          %v239 = vrsqrt.pop %v238
          %v240 = vmul.f32 %v238, %v239
          %vm241 = vcmp.eq.f32.partialorder %v238, inf
          %v242 = vsel %vm241, %v238, %v240
          %vm243 = vcmp.eq.f32.partialorder %v238, 0.0
          %v244 = vand.u32 %v238, 2147483648
          %v245 = vsel %vm243, %v244, %v242
          %v246 = vmax.f32 %v245, 1e-12
          %v247 = vrcp.pop %v246
          %v248 = vmul.f32 %v233, %v247
          %249 = vst [vmem:[%s145] sm:$0x1] %v248
        $region36: #{tpu_custom_call.1} parent=23 // pred_fallthru
          _
        %s250 = sand.u32 %s66, 1
        %s251 = scalar_lea.sflag [#allocation5], %s250
        %s252 = sand.u32 %s66, 1
        %s253 = scalar_lea.vmem [#allocation6], %s252
        // Predicated region
        $region37: #{tpu_custom_call.1} parent=23 // pred_check
          %p254 = pneg %p76
        $region38: #{tpu_custom_call.1} parent=23 // pred_check_branch
          %256 = sbr.rel (%p254) target = $region40
        $region39: #{tpu_custom_call.1} parent=23 // pred_region
          %s258 = ssub.s32 16, 16
          %259 = vsyncadd %s251, %s258
          %s260 = smul.addr %s22, 16
          %s261 = scalar_lea.hbm %s1, %s260
          %s263 = sshll.u32 %s253, 4
          %s264 = int_to_ptr.vmem [resolvable:$true] %s263
          %266 = dma.vmem_to_hbm [thread:$0]  %s264, 16, %s261, %s251
        $region40: #{tpu_custom_call.1} parent=23 // pred_fallthru
          _
      $region24: #{tpu_custom_call.1} parent=5 // pred_fallthru
        _
      %p267 = scmp.le.s32.totalorder 2, %s13
      // Predicated region
      $region41: #{tpu_custom_call.1} parent=5 // pred_check
        %p268 = pneg %p267
      $region42: #{tpu_custom_call.1} parent=5 // pred_check_branch
        %270 = sbr.rel (%p268) target = $region44
      $region43: #{tpu_custom_call.1} parent=5 // pred_region
        %s271 = ssub.s32 %s13, 2
        // Predicated region
        $region45: #{tpu_custom_call.1} parent=43 // pred_check
          %p272 = pneg %p82
        $region46: #{tpu_custom_call.1} parent=43 // pred_check_branch
          %274 = sbr.rel (%p272) target = $region48
        $region47: #{tpu_custom_call.1} parent=43 // pred_region
          %s275 = sand.u32 %s67, 1
          %s276 = scalar_lea.sflag [#allocation5], %s275
          %s277 = sand.u32 %s67, 1
          %s278 = scalar_lea.vmem [#allocation6], %s277
          %279 = dma.done %s276, 16
        $region48: #{tpu_custom_call.1} parent=43 // pred_fallthru
          _
      $region44: #{tpu_custom_call.1} parent=5 // pred_fallthru
        _
    $region6: #{tpu_custom_call.1} parent=1 // loop_footer
      %s17 = sadd.s32 1, %s13
    $region7: #{tpu_custom_call.1} parent=1 // loop_footer_branch
      %12 = sbr.rel target = $region3
    $region8: #{tpu_custom_call.1} parent=1 // loop_exit
      _
    %280 = vsyncpa [#allocation4], 1
    %s281 = scalar_lea.sflag [#allocation4], 1
    %282 = vsyncpa %s281, 1
    %283 = vsyncpa [#allocation5], 1
    %s284 = scalar_lea.sflag [#allocation5], 1
    %285 = vsyncpa %s284, 1

</llo_original>
